<compile_context>
chip_gen: v5e
topology: v5e:2x2
jax: 0.10.0
libtpu: 0.0.40
codegen_flags: <defaults>
</compile_context>

<pallas_src>
import jax
import jax.numpy as jnp
from jax import lax
from jax.experimental import pallas as pl
from jax.experimental.pallas import tpu as pltpu


# ---------------------------------------------------------------------------
# Chip-aware sizing helpers
# ---------------------------------------------------------------------------
def _chip_info():
    """(vmem_capacity_bytes, tensorcores_per_device) with safe fallbacks."""
    vmem_cap = 64 * 1024 * 1024          # conservative (v7x per-TC VMEM)
    num_tc = 2                           # conservative: assume 2 TCs share chip
    try:
        info = pltpu.get_tpu_info()
        vmem_cap = int(getattr(info, "vmem_capacity_bytes", vmem_cap))
    except Exception:
        pass
    try:
        kind = jax.devices()[0].device_kind.lower()
        if any(t in kind for t in ("v5 lite", "v5e", "v6 lite", "v6e")):
            num_tc = 1                   # 1 TC/chip: the grid is a serial loop
    except Exception:
        pass
    return vmem_cap, num_tc


def _pick_batch_block(batch, seq_len, per_batch_bytes, resident_bytes,
                      vmem_cap, num_tc, mxu_rows=256):
    """Largest batch block that fits the VMEM budget.

    Candidates keep the (bb, Yp) logits block sublane-aligned (bb % 8 == 0 or
    bb == batch). On multi-TC chips we only shrink to get >= 2 grid steps when
    the merged matmul keeps an MXU-dense M dimension (bb * S >= mxu_rows)."""
    cands = sorted({d for d in range(1, batch + 1)
                    if batch % d == 0 and (d % 8 == 0 or d == batch)})
    budget = max(int(vmem_cap * 0.55) - resident_bytes, per_batch_bytes)
    fitting = [d for d in cands if d * per_batch_bytes <= budget] or cands[:1]
    bb = fitting[-1]
    if num_tc >= 2 and batch // bb < 2:
        alt = [d for d in fitting if batch // d >= 2 and d * seq_len >= mxu_rows]
        if alt:
            bb = alt[-1]
        # TODO(synk): if B is too small, split the sequence axis instead of
        #             shrinking bb below the MXU-dense size.
    return bb


# ---------------------------------------------------------------------------
# Fused kernel: conv1d(same) + tanh + label attention + per-label projection
# ---------------------------------------------------------------------------
def _multicnn_fused_kernel(emb_ref, convw_ref, convb_ref, uwt_ref, fwt_ref,
                           fb_ref, out_ref, xpad_ref):
    # emb_ref  : (Bb, S, E)     bf16  batch block of embeddings
    # convw_ref: (k, E, F)      bf16  resident (constant index_map)
    # convb_ref: (1, F)         f32   resident
    # uwt_ref  : (F, Yp)        bf16  resident, U.weight^T, zero-padded labels
    # fwt_ref  : (F, Yp)        bf16  resident, final.weight^T, zero-padded
    # fb_ref   : (1, Yp)        f32   resident, final.bias, zero-padded
    # out_ref  : (Bb, Yp)       f32   logits (lane-dense; wrapper slices :Y)
    # xpad_ref : (Bb, S+2p, E)  bf16  VMEM scratch for the "same"-padding halo
    bb, s, e = emb_ref.shape
    k, _, f = convw_ref.shape
    yp = out_ref.shape[1]
    p = k // 2

    # ---- zero padding folded into the kernel (stays in VMEM) ----
    if p > 0:
        halo = jnp.zeros((bb, p, e), dtype=xpad_ref.dtype)
        xpad_ref[:, 0:p, :] = halo
        xpad_ref[:, p + s:p + s + p, :] = halo
    xpad_ref[:, p:p + s, :] = emb_ref[...]

    # ---- Conv1d (same padding) + bias + tanh: k merged (Bb*S, E)@(E, F) MXU
    #      matmuls with f32 accumulation. The per-tap sublane-offset slice is a
    #      VMEM-local relayout hidden under the MXU; the (Bb,S)->(Bb*S) merge
    #      is layout-preserving when S % 8 == 0.
    acc = jnp.zeros((bb * s, f), jnp.float32)
    for j in range(k):                              # k small & static: unrolled
        xs = xpad_ref[:, j:j + s, :].reshape(bb * s, e)
        acc = acc + lax.dot_general(
            xs, convw_ref[j],
            dimension_numbers=(((1,), (0,)), ((), ())),
            preferred_element_type=jnp.float32)
    h = jnp.tanh(acc + convb_ref[...])              # (Bb*S, F) f32
    hb = h.astype(emb_ref.dtype)                    # bf16 MXU operand

    # ---- label attention, fully merged on the MXU (M = Bb*S, lane-dense Yp) --
    scores = lax.dot_general(                       # (Bb*S, Yp) f32
        hb, uwt_ref[...], dimension_numbers=(((1,), (0,)), ((), ())),
        preferred_element_type=jnp.float32)
    g = lax.dot_general(                            # (Bb*S, Yp) f32
        hb, fwt_ref[...], dimension_numbers=(((1,), (0,)), ((), ())),
        preferred_element_type=jnp.float32)
    scores = scores.reshape(bb, s, yp)
    g = g.reshape(bb, s, yp)

    # softmax over the sequence axis, per (batch, label); alpha stays f32
    m = jnp.max(scores, axis=1, keepdims=True)      # (Bb, 1, Yp)
    ex = jnp.exp(scores - m)
    denom = jnp.sum(ex, axis=1, keepdims=True)
    alpha = ex * pl.reciprocal(denom, approx=True)  # (Bb, S, Yp) f32

    # y[b,l] = sum_s alpha[b,s,l] * (sum_f h[b,s,f]*final_w[l,f]) + final_b[l]
    y = jnp.sum(alpha * g, axis=1) + fb_ref[...]    # (Bb, Yp) f32
    out_ref[...] = y.astype(out_ref.dtype)          # single lane-dense store


# ---------------------------------------------------------------------------
# Full MultiCNN forward (single-filter branch)
# ---------------------------------------------------------------------------
def multicnn_forward(token_ids, params, *, mxu_dtype=jnp.bfloat16):
    """MultiCNN forward (single filter size). Returns label logits (B, Y)."""
    conv_w = params["conv_w"]                       # (k, E, F) == torch (F,E,k)^T
    k, E, F = conv_w.shape
    assert k % 2 == 1, "only odd filter sizes keep the sequence length"
    pad = k // 2
    B, S = token_ids.shape
    Y = params["u_w"].shape[0]
    Yp = ((Y + 127) // 128) * 128                   # lane-dense label axis

    # WordRep: embedding lookup (dropout = identity at inference). The bf16
    # cast is folded into the gather so only (B,S,E) bf16 hits HBM once.
    # TODO(synk): for very long B*S / large vocab, fuse the gather into the
    #             kernel via scalar-prefetched token ids + DMA gather.
    emb = jnp.take(params["embed"].astype(mxu_dtype), token_ids, axis=0)

    # Resident weights: conv taps + transposed, zero-padded label projections.
    conv_w_b = conv_w.astype(mxu_dtype)
    conv_b = params["conv_b"].reshape(1, F).astype(jnp.float32)
    uwt = jnp.zeros((F, Yp), mxu_dtype).at[:, :Y].set(
        params["u_w"].T.astype(mxu_dtype))
    fwt = jnp.zeros((F, Yp), mxu_dtype).at[:, :Y].set(
        params["final_w"].T.astype(mxu_dtype))
    fb = jnp.zeros((1, Yp), jnp.float32).at[:, :Y].set(
        params["final_b"].astype(jnp.float32)[None, :])

    # Generation-aware batch-block sizing (VMEM budget incl. f32 temporaries).
    vmem_cap, num_tc = _chip_info()
    isz = jnp.dtype(mxu_dtype).itemsize
    per_batch = (S + 2 * pad) * E * isz * 3         # emb (x2 bufs) + pad scratch
    per_batch += S * F * (4 + 4 + isz)              # conv acc, h f32, h bf16
    per_batch += S * Yp * 4 * 4                     # scores, g, exp, alpha
    per_batch += Yp * 4 * 2                         # logits block (x2 bufs)
    resident = (k * E * F + 2 * F * Yp) * isz + (F + Yp) * 4 + (2 << 20)
    bb = _pick_batch_block(B, S, per_batch, resident, vmem_cap, num_tc)

    out = pl.pallas_call(
        _multicnn_fused_kernel,
        out_shape=jax.ShapeDtypeStruct((B, Yp), jnp.float32),
        grid_spec=pltpu.PrefetchScalarGridSpec(
            num_scalar_prefetch=0,
            grid=(B // bb,),
            in_specs=[
                pl.BlockSpec((bb, S, E), lambda i: (i, 0, 0)),
                pl.BlockSpec((k, E, F), lambda i: (0, 0, 0)),     # resident
                pl.BlockSpec((1, F), lambda i: (0, 0)),           # resident
                pl.BlockSpec((F, Yp), lambda i: (0, 0)),          # resident
                pl.BlockSpec((F, Yp), lambda i: (0, 0)),          # resident
                pl.BlockSpec((1, Yp), lambda i: (0, 0)),          # resident
            ],
            out_specs=pl.BlockSpec((bb, Yp), lambda i: (i, 0)),
            scratch_shapes=[pltpu.VMEM((bb, S + 2 * pad, E), mxu_dtype)],
        ),
        compiler_params=pltpu.CompilerParams(
            dimension_semantics=("parallel",),
            vmem_limit_bytes=int(min(vmem_cap * 0.75, 100 * 2 ** 20)),
        ),
    )(emb, conv_w_b, conv_b, uwt, fwt, fb)
    # TODO(synk): filter_num > 1 would run the conv stage once per filter size
    #             and concatenate along F before the attention stage; label
    #             counts in the thousands would add a label-tile grid axis.
    return out[:, :Y]


# ---------------------------------------------------------------------------
# Pure-jnp reference (mirrors the kernel's bf16 MXU-input rounding)
# ---------------------------------------------------------------------------
def _reference_forward(token_ids, params, *, mxu_dtype=jnp.bfloat16):
    q = lambda a: a.astype(mxu_dtype).astype(jnp.float32)
    emb = jnp.take(q(params["embed"]), token_ids, axis=0)
    k = params["conv_w"].shape[0]
    pad = k // 2
    S = emb.shape[1]
    xp = jnp.pad(emb, ((0, 0), (pad, pad), (0, 0)))
    w = q(params["conv_w"])
    conv = sum(jnp.einsum("bse,ef->bsf", xp[:, j:j + S, :], w[j])
               for j in range(k))
    h = q(jnp.tanh(conv + params["conv_b"][None, None, :]))
    scores = jnp.einsum("yf,bsf->bys", q(params["u_w"]), h)
    alpha = jax.nn.softmax(scores, axis=-1)                    # over sequence
    ctx = jnp.einsum("bys,bsf->byf", alpha, h)
    return (jnp.sum(q(params["final_w"])[None] * ctx, axis=-1)
            + params["final_b"][None])


if __name__ == "__main__":
    # Small, TPU-tile-friendly shapes: batch=2, seq=16, embed=128,
    # num_filter_maps=128, filter_size=3, num_labels Y=16, vocab=97.
    B, S, E, F, K, Y, V = 2, 16, 128, 128, 3, 16, 97

    key = jax.random.PRNGKey(0)
    k_ids, k_emb, k_cw, k_cb, k_uw, k_fw, k_fb = jax.random.split(key, 7)
    token_ids = jax.random.randint(k_ids, (B, S), 1, V, dtype=jnp.int32)
    embed = jax.random.normal(k_emb, (V, E), dtype=jnp.float32) * 0.5
    embed = embed.at[0].set(0.0)                       # padding_idx=0 row
    params = {
        "embed": embed,
        "conv_w": jax.random.normal(k_cw, (K, E, F), dtype=jnp.float32) * 0.05,
        "conv_b": jax.random.normal(k_cb, (F,), dtype=jnp.float32) * 0.05,
        "u_w": jax.random.normal(k_uw, (Y, F), dtype=jnp.float32) * 0.1,
        "final_w": jax.random.normal(k_fw, (Y, F), dtype=jnp.float32) * 0.1,
        "final_b": jax.random.normal(k_fb, (Y,), dtype=jnp.float32) * 0.1,
    }

    y = jax.jit(multicnn_forward)(token_ids, params)
    y = jax.block_until_ready(y)

    ref = _reference_forward(token_ids, params)
    assert y.shape == (B, Y)
    err = jnp.max(jnp.abs(y - ref))
    assert jnp.allclose(y, ref, atol=2e-2, rtol=2e-2), (
        f"mismatch vs reference, max abs err {err}")

    print("KERNEL_OK")
</pallas_src>

<mosaic_0001>
module attributes {stable_mosaic.version = 11 : i64} {
  func.func @_multicnn_fused_kernel(%arg0: i32, %arg1: memref<2x16x128xbf16, #tpu.memory_space<vmem>>, %arg2: memref<3x128x128xbf16, #tpu.memory_space<vmem>>, %arg3: memref<1x128xf32, #tpu.memory_space<vmem>>, %arg4: memref<128x128xbf16, #tpu.memory_space<vmem>>, %arg5: memref<128x128xbf16, #tpu.memory_space<vmem>>, %arg6: memref<1x128xf32, #tpu.memory_space<vmem>>, %arg7: memref<2x128xf32, #tpu.memory_space<vmem>>, %arg8: memref<2x18x128xbf16, #tpu.memory_space<vmem>>) attributes {dimension_semantics = [#tpu.dimension_semantics<parallel>], iteration_bounds = array<i64: 1>, scalar_prefetch = 0 : i64, scratch_operands = 1 : i64, tpu.core_type = #tpu.core_type<tc>, window_params = [{transform_indices = @transform_0, window_bounds = array<i64: 2, 16, 128>}, {pipeline_mode = #tpu.pipeline_mode<synchronous>, transform_indices = @transform_1, window_bounds = array<i64: 3, 128, 128>}, {pipeline_mode = #tpu.pipeline_mode<synchronous>, transform_indices = @transform_2, window_bounds = array<i64: 1, 128>}, {pipeline_mode = #tpu.pipeline_mode<synchronous>, transform_indices = @transform_3, window_bounds = array<i64: 128, 128>}, {pipeline_mode = #tpu.pipeline_mode<synchronous>, transform_indices = @transform_4, window_bounds = array<i64: 128, 128>}, {pipeline_mode = #tpu.pipeline_mode<synchronous>, transform_indices = @transform_5, window_bounds = array<i64: 1, 128>}, {transform_indices = @transform_6, window_bounds = array<i64: 2, 128>}]} {
    %cst = arith.constant 0.000000e+00 : bf16
    %0 = vector.broadcast %cst : bf16 to vector<2x1x128xbf16>
    %c0 = arith.constant 0 : index
    %c0_0 = arith.constant 0 : index
    %c0_1 = arith.constant 0 : index
    %1 = vector.load %arg8[%c0, %c0_0, %c0_1] : memref<2x18x128xbf16, #tpu.memory_space<vmem>>, vector<2x1x128xbf16>
    tpu.vector_store %arg8[%c0, %c0_0, %c0_1], %0 {strides = array<i32>} : memref<2x18x128xbf16, #tpu.memory_space<vmem>>, vector<2x1x128xbf16>,
    %c0_2 = arith.constant 0 : index
    %c17 = arith.constant 17 : index
    %c0_3 = arith.constant 0 : index
    %2 = vector.load %arg8[%c0_2, %c17, %c0_3] : memref<2x18x128xbf16, #tpu.memory_space<vmem>>, vector<2x1x128xbf16>
    tpu.vector_store %arg8[%c0_2, %c17, %c0_3], %0 {strides = array<i32>} : memref<2x18x128xbf16, #tpu.memory_space<vmem>>, vector<2x1x128xbf16>,
    %c0_4 = arith.constant 0 : index
    %c0_5 = arith.constant 0 : index
    %c0_6 = arith.constant 0 : index
    %3 = vector.load %arg1[%c0_4, %c0_5, %c0_6] : memref<2x16x128xbf16, #tpu.memory_space<vmem>>, vector<2x16x128xbf16>
    %c0_7 = arith.constant 0 : index
    %c1 = arith.constant 1 : index
    %c0_8 = arith.constant 0 : index
    %4 = vector.load %arg8[%c0_7, %c1, %c0_8] : memref<2x18x128xbf16, #tpu.memory_space<vmem>>, vector<2x16x128xbf16>
    tpu.vector_store %arg8[%c0_7, %c1, %c0_8], %3 {strides = array<i32>} : memref<2x18x128xbf16, #tpu.memory_space<vmem>>, vector<2x16x128xbf16>,
    %cst_9 = arith.constant 0.000000e+00 : f32
    %5 = vector.broadcast %cst_9 : f32 to vector<32x128xf32>
    %c0_10 = arith.constant 0 : index
    %c0_11 = arith.constant 0 : index
    %c0_12 = arith.constant 0 : index
    %6 = vector.load %arg8[%c0_10, %c0_11, %c0_12] : memref<2x18x128xbf16, #tpu.memory_space<vmem>>, vector<2x16x128xbf16>
    %7 = vector.shape_cast %6 : vector<2x16x128xbf16> to vector<32x128xbf16>
    %c0_13 = arith.constant 0 : index
    %c0_14 = arith.constant 0 : index
    %c0_15 = arith.constant 0 : index
    %8 = vector.load %arg2[%c0_13, %c0_14, %c0_15] : memref<3x128x128xbf16, #tpu.memory_space<vmem>>, vector<1x128x128xbf16>
    %9 = vector.shape_cast %8 : vector<1x128x128xbf16> to vector<128x128xbf16>
    %cst_16 = arith.constant dense<0.000000e+00> : vector<32x128xf32>
    %10 = tpu.matmul %7, %9, %cst_16 {dimension_numbers = #tpu.dot_dimension_numbers<[1], [0], [0], [1], [0, 0, 1, 1], [], []>} : vector<32x128xbf16>, vector<128x128xbf16>, vector<32x128xf32> -> vector<32x128xf32>
    %11 = arith.addf %5, %10 : vector<32x128xf32>
    %c0_17 = arith.constant 0 : index
    %c1_18 = arith.constant 1 : index
    %c0_19 = arith.constant 0 : index
    %12 = vector.load %arg8[%c0_17, %c1_18, %c0_19] : memref<2x18x128xbf16, #tpu.memory_space<vmem>>, vector<2x16x128xbf16>
    %13 = vector.shape_cast %12 : vector<2x16x128xbf16> to vector<32x128xbf16>
    %c1_20 = arith.constant 1 : index
    %c0_21 = arith.constant 0 : index
    %c0_22 = arith.constant 0 : index
    %14 = vector.load %arg2[%c1_20, %c0_21, %c0_22] : memref<3x128x128xbf16, #tpu.memory_space<vmem>>, vector<1x128x128xbf16>
    %15 = vector.shape_cast %14 : vector<1x128x128xbf16> to vector<128x128xbf16>
    %cst_23 = arith.constant dense<0.000000e+00> : vector<32x128xf32>
    %16 = tpu.matmul %13, %15, %cst_23 {dimension_numbers = #tpu.dot_dimension_numbers<[1], [0], [0], [1], [0, 0, 1, 1], [], []>} : vector<32x128xbf16>, vector<128x128xbf16>, vector<32x128xf32> -> vector<32x128xf32>
    %17 = arith.addf %11, %16 : vector<32x128xf32>
    %c0_24 = arith.constant 0 : index
    %c2 = arith.constant 2 : index
    %c0_25 = arith.constant 0 : index
    %18 = vector.load %arg8[%c0_24, %c2, %c0_25] : memref<2x18x128xbf16, #tpu.memory_space<vmem>>, vector<2x16x128xbf16>
    %19 = vector.shape_cast %18 : vector<2x16x128xbf16> to vector<32x128xbf16>
    %c2_26 = arith.constant 2 : index
    %c0_27 = arith.constant 0 : index
    %c0_28 = arith.constant 0 : index
    %20 = vector.load %arg2[%c2_26, %c0_27, %c0_28] : memref<3x128x128xbf16, #tpu.memory_space<vmem>>, vector<1x128x128xbf16>
    %21 = vector.shape_cast %20 : vector<1x128x128xbf16> to vector<128x128xbf16>
    %cst_29 = arith.constant dense<0.000000e+00> : vector<32x128xf32>
    %22 = tpu.matmul %19, %21, %cst_29 {dimension_numbers = #tpu.dot_dimension_numbers<[1], [0], [0], [1], [0, 0, 1, 1], [], []>} : vector<32x128xbf16>, vector<128x128xbf16>, vector<32x128xf32> -> vector<32x128xf32>
    %23 = arith.addf %17, %22 : vector<32x128xf32>
    %c0_30 = arith.constant 0 : index
    %c0_31 = arith.constant 0 : index
    %24 = vector.load %arg3[%c0_30, %c0_31] : memref<1x128xf32, #tpu.memory_space<vmem>>, vector<1x128xf32>
    %25 = vector.broadcast %24 : vector<1x128xf32> to vector<32x128xf32>
    %26 = arith.addf %23, %25 : vector<32x128xf32>
    %27 = math.tanh %26 : vector<32x128xf32>
    %28 = arith.truncf %27 : vector<32x128xf32> to vector<32x128xbf16>
    %c0_32 = arith.constant 0 : index
    %c0_33 = arith.constant 0 : index
    %29 = vector.load %arg4[%c0_32, %c0_33] : memref<128x128xbf16, #tpu.memory_space<vmem>>, vector<128x128xbf16>
    %cst_34 = arith.constant dense<0.000000e+00> : vector<32x128xf32>
    %30 = tpu.matmul %28, %29, %cst_34 {dimension_numbers = #tpu.dot_dimension_numbers<[1], [0], [0], [1], [0, 0, 1, 1], [], []>} : vector<32x128xbf16>, vector<128x128xbf16>, vector<32x128xf32> -> vector<32x128xf32>
    %c0_35 = arith.constant 0 : index
    %c0_36 = arith.constant 0 : index
    %31 = vector.load %arg5[%c0_35, %c0_36] : memref<128x128xbf16, #tpu.memory_space<vmem>>, vector<128x128xbf16>
    %cst_37 = arith.constant dense<0.000000e+00> : vector<32x128xf32>
    %32 = tpu.matmul %28, %31, %cst_37 {dimension_numbers = #tpu.dot_dimension_numbers<[1], [0], [0], [1], [0, 0, 1, 1], [], []>} : vector<32x128xbf16>, vector<128x128xbf16>, vector<32x128xf32> -> vector<32x128xf32>
    %33 = vector.shape_cast %30 : vector<32x128xf32> to vector<2x16x128xf32>
    %34 = vector.shape_cast %32 : vector<32x128xf32> to vector<2x16x128xf32>
    %cst_38 = arith.constant dense<0xFF800000> : vector<2x128xf32>
    %35 = vector.multi_reduction <maximumf>, %33, %cst_38 [1] : vector<2x16x128xf32> to vector<2x128xf32>
    %36 = vector.shape_cast %35 : vector<2x128xf32> to vector<2x1x128xf32>
    %37 = vector.broadcast %36 : vector<2x1x128xf32> to vector<2x16x128xf32>
    %38 = arith.subf %33, %37 : vector<2x16x128xf32>
    %39 = math.exp %38 : vector<2x16x128xf32>
    %cst_39 = arith.constant dense<0.000000e+00> : vector<2x128xf32>
    %40 = vector.multi_reduction <add>, %39, %cst_39 [1] : vector<2x16x128xf32> to vector<2x128xf32>
    %41 = vector.shape_cast %40 : vector<2x128xf32> to vector<2x1x128xf32>
    %42 = tpu.reciprocal %41 {approx = true} : vector<2x1x128xf32> -> vector<2x1x128xf32>
    %43 = vector.broadcast %42 : vector<2x1x128xf32> to vector<2x16x128xf32>
    %44 = arith.mulf %39, %43 : vector<2x16x128xf32>
    %45 = arith.mulf %44, %34 : vector<2x16x128xf32>
    %cst_40 = arith.constant dense<0.000000e+00> : vector<2x128xf32>
    %46 = vector.multi_reduction <add>, %45, %cst_40 [1] : vector<2x16x128xf32> to vector<2x128xf32>
    %c0_41 = arith.constant 0 : index
    %c0_42 = arith.constant 0 : index
    %47 = vector.load %arg6[%c0_41, %c0_42] : memref<1x128xf32, #tpu.memory_space<vmem>>, vector<1x128xf32>
    %48 = vector.broadcast %47 : vector<1x128xf32> to vector<2x128xf32>
    %49 = arith.addf %46, %48 : vector<2x128xf32>
    %c0_43 = arith.constant 0 : index
    %c0_44 = arith.constant 0 : index
    %50 = vector.load %arg7[%c0_43, %c0_44] : memref<2x128xf32, #tpu.memory_space<vmem>>, vector<2x128xf32>
    tpu.vector_store %arg7[%c0_43, %c0_44], %49 {strides = array<i32>} : memref<2x128xf32, #tpu.memory_space<vmem>>, vector<2x128xf32>,
    return
  }
  func.func @transform_0(%arg0: i32) -> (i32, i32, i32) {
    %c0_i32 = arith.constant 0 : i32
    %c0_i32_0 = arith.constant 0 : i32
    %c0_i32_1 = arith.constant 0 : i32
    return %arg0, %c0_i32, %c0_i32_0 : i32, i32, i32
  }
  func.func @transform_1(%arg0: i32) -> (i32, i32, i32) {
    %c0_i32 = arith.constant 0 : i32
    %c0_i32_0 = arith.constant 0 : i32
    %c0_i32_1 = arith.constant 0 : i32
    %c0_i32_2 = arith.constant 0 : i32
    return %c0_i32, %c0_i32_0, %c0_i32_1 : i32, i32, i32
  }
  func.func @transform_2(%arg0: i32) -> (i32, i32) {
    %c0_i32 = arith.constant 0 : i32
    %c0_i32_0 = arith.constant 0 : i32
    %c0_i32_1 = arith.constant 0 : i32
    return %c0_i32, %c0_i32_0 : i32, i32
  }
  func.func @transform_3(%arg0: i32) -> (i32, i32) {
    %c0_i32 = arith.constant 0 : i32
    %c0_i32_0 = arith.constant 0 : i32
    %c0_i32_1 = arith.constant 0 : i32
    return %c0_i32, %c0_i32_0 : i32, i32
  }
  func.func @transform_4(%arg0: i32) -> (i32, i32) {
    %c0_i32 = arith.constant 0 : i32
    %c0_i32_0 = arith.constant 0 : i32
    %c0_i32_1 = arith.constant 0 : i32
    return %c0_i32, %c0_i32_0 : i32, i32
  }
  func.func @transform_5(%arg0: i32) -> (i32, i32) {
    %c0_i32 = arith.constant 0 : i32
    %c0_i32_0 = arith.constant 0 : i32
    %c0_i32_1 = arith.constant 0 : i32
    return %c0_i32, %c0_i32_0 : i32, i32
  }
  func.func @transform_6(%arg0: i32) -> (i32, i32) {
    %c0_i32 = arith.constant 0 : i32
    %c0_i32_0 = arith.constant 0 : i32
    return %arg0, %c0_i32 : i32, i32
  }
}

</mosaic_0001>

<llo_original>
// kernel: multicnn_forward.1
$region0: #{multicnn_forward.1}
  #allocation0 [shape = 'u32[]', space=smem, size = 0x4, offset = 0x4, fixed_abs, tag = 'smem constant byte address 0x4 - core index']
  #allocation1 [shape = 'u32[72,128]{1,0:T(1,128)}', space=vmem, size = 0x9000, scoped, tag = 'internal scratch']
  #allocation2 [shape = 'bf16[2,18,128]{2,1,0:T(8,128)(2,1)}', space=vmem, size = 0x3000, scoped, tag = 'scratch operand']
  %s0 = inlined_call_operand.vmem [shape: bf16[2,16,128], index: 0, kind: input, shape index: {}]
  %s1 = inlined_call_operand.vmem [shape: bf16[3,128,128], index: 1, kind: input, shape index: {}]
  %s2 = inlined_call_operand.vmem [shape: f32[1,128], index: 2, kind: input, shape index: {}]
  %s3 = inlined_call_operand.vmem [shape: bf16[128,128], index: 3, kind: input, shape index: {}]
  %s4 = inlined_call_operand.vmem [shape: bf16[128,128], index: 4, kind: input, shape index: {}]
  %s5 = inlined_call_operand.vmem [shape: f32[1,128], index: 5, kind: input, shape index: {}]
  %s6 = inlined_call_operand.hbm [shape: f32[2,128], index: 6, kind: output, shape index: {}]
  %s7 = sld [smem:[#allocation0]]
  $region34: #{multicnn_forward.1} parent=0
    _
  %s9 = ssub.s32 1, %s7
  %s10 = scalar_select 0, %s9, %s7
  $region1: #{multicnn_forward.1} parent=0
    #allocation3 [shape = 'u8[1024]{0}', space=vmem, size = 0x400, scoped, tag = 'output window, operand 0, single buffered']
    #allocation4 [shape = 's32[1]{0}', space=sflag, size = 0x4, scoped, tag = 'scoped memory for multicnn_forward.1']
    %11 = vsyncpa [#allocation4], 0
    // Predicated region
    $region2: #{multicnn_forward.1} parent=1 // pred_check
      _
    $region3: #{multicnn_forward.1} parent=1 // pred_check_branch
      %13 = sbr.rel (0) target = $region5
    $region4: #{multicnn_forward.1} parent=1 // pred_region
      _
    $region5: #{multicnn_forward.1} parent=1 // pred_fallthru
      _
    // Predicated region
    $region6: #{multicnn_forward.1} parent=1 // pred_check
      _
    $region7: #{multicnn_forward.1} parent=1 // pred_check_branch
      %15 = sbr.rel (0) target = $region9
    $region8: #{multicnn_forward.1} parent=1 // pred_region
      _
    $region9: #{multicnn_forward.1} parent=1 // pred_fallthru
      _
    // Predicated region
    $region10: #{multicnn_forward.1} parent=1 // pred_check
      _
    $region11: #{multicnn_forward.1} parent=1 // pred_check_branch
      %17 = sbr.rel (0) target = $region13
    $region12: #{multicnn_forward.1} parent=1 // pred_region
      _
    $region13: #{multicnn_forward.1} parent=1 // pred_fallthru
      _
    // Predicated region
    $region14: #{multicnn_forward.1} parent=1 // pred_check
      _
    $region15: #{multicnn_forward.1} parent=1 // pred_check_branch
      %19 = sbr.rel (0) target = $region17
    $region16: #{multicnn_forward.1} parent=1 // pred_region
      _
    $region17: #{multicnn_forward.1} parent=1 // pred_fallthru
      _
    // Predicated region
    $region18: #{multicnn_forward.1} parent=1 // pred_check
      _
    $region19: #{multicnn_forward.1} parent=1 // pred_check_branch
      %21 = sbr.rel (0) target = $region21
    $region20: #{multicnn_forward.1} parent=1 // pred_region
      _
    $region21: #{multicnn_forward.1} parent=1 // pred_fallthru
      _
    // Predicated region
    $region22: #{multicnn_forward.1} parent=1 // pred_check
      _
    $region23: #{multicnn_forward.1} parent=1 // pred_check_branch
      %23 = sbr.rel (0) target = $region25
    $region24: #{multicnn_forward.1} parent=1 // pred_region
      _
    $region25: #{multicnn_forward.1} parent=1 // pred_fallthru
      _
    %vm25 = vcmask 1040384
    %vm26 = vsmask.f32 256
    %vm27 = vmand %vm25, %vm26
    %v28 = vld [vmem:[#allocation2] sm:$0x1]
    %v29 = vsel %vm27, 0, %v28
    %30 = vst [vmem:[#allocation2] sm:$0x1] %v29
    %v31 = vld [vmem:[#allocation2 + $0xc] sm:$0x1]
    %v32 = vsel %vm27, 0, %v31
    %33 = vst [vmem:[#allocation2 + $0xc] sm:$0x1] %v32
    %vm34 = vsmask.f32 7938
    %vm35 = vmand %vm25, %vm34
    %v36 = vld [vmem:[#allocation2 + $0x8] sm:$0x1]
    %v37 = vsel %vm35, 0, %v36
    %38 = vst [vmem:[#allocation2 + $0x8] sm:$0x1] %v37
    %v39 = vld [vmem:[#allocation2 + $0x14] sm:$0x1]
    %v40 = vsel %vm35, 0, %v39
    %41 = vst [vmem:[#allocation2 + $0x14] sm:$0x1] %v40
    %v42 = vld [vmem:[%s0] sm:$0xf]
    %v43 = vld [vmem:[%s0 + $0x4] sm:$0xf]
    %v44 = vld [vmem:[%s0 + $0x8] sm:$0xf]
    %v45 = vld [vmem:[%s0 + $0xc] sm:$0xf]
    %vm46 = vsmask.f32 4368
    %vm47 = vmor %vm26, %vm46
    %v49 = vshrl.u32 %v42, 16
    %v51 = vrot.slane %v49, 7
    %v52 = vshll.u32 %v42, 16
    %v54 = vor.u32 %v51, %v52
    %v55 = vrot.slane %v51, 4
    %v57 = vshrl.u32 %v43, 16
    %v59 = vrot.slane %v57, 7
    %v60 = vshll.u32 %v43, 16
    %v62 = vor.u32 %v59, %v60
    %v63 = vsel %vm47, %v55, %v62
    %v64 = vrot.slane %v59, 4
    %v66 = vshrl.u32 %v44, 16
    %v68 = vrot.slane %v66, 7
    %v69 = vshll.u32 %v44, 16
    %v71 = vor.u32 %v68, %v69
    %v72 = vrot.slane %v68, 4
    %v74 = vshrl.u32 %v45, 16
    %v76 = vrot.slane %v74, 7
    %v77 = vshll.u32 %v45, 16
    %v79 = vor.u32 %v76, %v77
    %v80 = vsel %vm47, %v72, %v79
    %v81 = vrot.slane %v76, 4
    %vm88 = vcmask 1043456
    %vm89 = vmand %vm88, %vm34
    %v90 = vld [vmem:[#allocation2] sm:$0xf]
    %v91 = vsel %vm89, %v54, %v90
    %92 = vst [vmem:[#allocation2] sm:$0xf] %v91
    %93 = vst [vmem:[#allocation2 + $0x4] sm:$0xf] %v63
    %v94 = vld [vmem:[#allocation2 + $0x8] sm:$0x1]
    %v95 = vsel %vm27, %v64, %v94
    %96 = vst [vmem:[#allocation2 + $0x8] sm:$0x1] %v95
    %v97 = vld [vmem:[#allocation2 + $0xc] sm:$0xf]
    %v98 = vsel %vm89, %v71, %v97
    %99 = vst [vmem:[#allocation2 + $0xc] sm:$0xf] %v98
    %100 = vst [vmem:[#allocation2 + $0x10] sm:$0xf] %v80
    %v101 = vld [vmem:[#allocation2 + $0x14] sm:$0x1]
    %v102 = vsel %vm27, %v81, %v101
    %103 = vst [vmem:[#allocation2 + $0x14] sm:$0x1] %v102
    %v104 = vld [vmem:[#allocation2] sm:$0xf]
    %v105 = vld [vmem:[#allocation2 + $0x4] sm:$0xf]
    %v106 = vld [vmem:[#allocation2 + $0xc] sm:$0xf]
    %v107 = vld [vmem:[#allocation2 + $0x10] sm:$0xf]
    %v108 = vld [vmem:[%s1] sm:$0xf]
    %v109 = vld [vmem:[%s1 + $0x4] sm:$0xf]
    %v110 = vld [vmem:[%s1 + $0x8] sm:$0xf]
    %v111 = vld [vmem:[%s1 + $0xc] sm:$0xf]
    %v112 = vld [vmem:[%s1 + $0x10] sm:$0xf]
    %v113 = vld [vmem:[%s1 + $0x14] sm:$0xf]
    %v114 = vld [vmem:[%s1 + $0x18] sm:$0xf]
    %v115 = vld [vmem:[%s1 + $0x1c] sm:$0xf]
    %v116 = vld [vmem:[%s1 + $0x20] sm:$0xf]
    %v117 = vld [vmem:[%s1 + $0x24] sm:$0xf]
    %v118 = vld [vmem:[%s1 + $0x28] sm:$0xf]
    %v119 = vld [vmem:[%s1 + $0x2c] sm:$0xf]
    %v120 = vld [vmem:[%s1 + $0x30] sm:$0xf]
    %v121 = vld [vmem:[%s1 + $0x34] sm:$0xf]
    %v122 = vld [vmem:[%s1 + $0x38] sm:$0xf]
    %v123 = vld [vmem:[%s1 + $0x3c] sm:$0xf]
    %v124 = vld [vmem:[#allocation2 + $0x8] sm:$0x1]
    %v125 = vld [vmem:[#allocation2 + $0x14] sm:$0x1]
    %vm126 = vsmask.f32 3328
    %vm127 = vsmask.f32 7440
    %vm128 = vmor %vm126, %vm127
    %v130 = vshrl.u32 %v104, 16
    %v132 = vrot.slane %v130, 4
    %v133 = vshll.u32 %v104, 16
    %v135 = vrot.slane %v133, 5
    %v136 = vor.u32 %v132, %v135
    %v137 = vrot.slane %v136, 4
    %v139 = vshll.u32 %v105, 16
    %v141 = vrot.slane %v139, 5
    %v142 = vsel %vm128, %v137, %v141
    %v143 = vshrl.u32 %v105, 16
    %v145 = vrot.slane %v143, 4
    %v146 = vor.u32 %v145, %v141
    %v147 = vrot.slane %v146, 4
    %v149 = vshll.u32 %v124, 16
    %v151 = vrot.slane %v149, 5
    %v152 = vsel %vm128, %v147, %v151
    %v154 = vshrl.u32 %v106, 16
    %v156 = vrot.slane %v154, 4
    %v157 = vshll.u32 %v106, 16
    %v159 = vrot.slane %v157, 5
    %v160 = vor.u32 %v156, %v159
    %v161 = vrot.slane %v160, 4
    %v163 = vshll.u32 %v107, 16
    %v165 = vrot.slane %v163, 5
    %v166 = vsel %vm128, %v161, %v165
    %v167 = vshrl.u32 %v107, 16
    %v169 = vrot.slane %v167, 4
    %v170 = vor.u32 %v169, %v165
    %v171 = vrot.slane %v170, 4
    %v173 = vshll.u32 %v125, 16
    %v175 = vrot.slane %v173, 5
    %v176 = vsel %vm128, %v171, %v175
    %s177 = scalar_lea.vmem %s1, 64
    %v178 = vld [vmem:[%s177] sm:$0xf]
    %v179 = vld [vmem:[%s177 + $0x4] sm:$0xf]
    %v180 = vld [vmem:[%s177 + $0x8] sm:$0xf]
    %v181 = vld [vmem:[%s177 + $0xc] sm:$0xf]
    %v182 = vld [vmem:[%s177 + $0x10] sm:$0xf]
    %v183 = vld [vmem:[%s177 + $0x14] sm:$0xf]
    %v184 = vld [vmem:[%s177 + $0x18] sm:$0xf]
    %v185 = vld [vmem:[%s177 + $0x1c] sm:$0xf]
    %v186 = vld [vmem:[%s177 + $0x20] sm:$0xf]
    %v187 = vld [vmem:[%s177 + $0x24] sm:$0xf]
    %v188 = vld [vmem:[%s177 + $0x28] sm:$0xf]
    %v189 = vld [vmem:[%s177 + $0x2c] sm:$0xf]
    %v190 = vld [vmem:[%s177 + $0x30] sm:$0xf]
    %v191 = vld [vmem:[%s177 + $0x34] sm:$0xf]
    %v192 = vld [vmem:[%s177 + $0x38] sm:$0xf]
    %v193 = vld [vmem:[%s177 + $0x3c] sm:$0xf]
    %v194 = vunpack.c.l.b16 %v142
    %v195 = vunpack.c.l.b16 %v152
    %v196 = vunpack.c.l.b16 %v166
    %v197 = vunpack.c.l.b16 %v176
    %v198 = vpack.c.b16 %v195, %v194
    %v199 = vpack.c.b16 %v197, %v196
    %v218 = vunpack.c.l.b16 %v178
    %v219 = vunpack.c.l.b16 %v179
    %v220 = vunpack.c.l.b16 %v180
    %v221 = vunpack.c.l.b16 %v181
    %v222 = vunpack.c.l.b16 %v182
    %v223 = vunpack.c.l.b16 %v183
    %v224 = vunpack.c.l.b16 %v184
    %v225 = vunpack.c.l.b16 %v185
    %v226 = vunpack.c.l.b16 %v186
    %v227 = vunpack.c.l.b16 %v187
    %v228 = vunpack.c.l.b16 %v188
    %v229 = vunpack.c.l.b16 %v189
    %v230 = vunpack.c.l.b16 %v190
    %v231 = vunpack.c.l.b16 %v191
    %v232 = vunpack.c.l.b16 %v192
    %v233 = vunpack.c.l.b16 %v193
    %v234 = vpack.c.b16 %v219, %v218
    %v235 = vpack.c.b16 %v221, %v220
    %v236 = vpack.c.b16 %v223, %v222
    %v237 = vpack.c.b16 %v225, %v224
    %v238 = vpack.c.b16 %v227, %v226
    %v239 = vpack.c.b16 %v229, %v228
    %v240 = vpack.c.b16 %v231, %v230
    %v241 = vpack.c.b16 %v233, %v232
    %250 = vmatpush.bf16.msra.mxu0 %v241
    %251 = vmatpush.bf16.msra.mxu0 %v240
    %252 = vmatpush.bf16.msra.mxu0 %v239
    %253 = vmatpush.bf16.msra.mxu0 %v238
    %254 = vmatpush.bf16.msra.mxu0 %v237
    %255 = vmatpush.bf16.msra.mxu0 %v236
    %256 = vmatpush.bf16.msra.mxu0 %v235
    %257 = vmatpush.bf16.msra.mxu0 %v234
    %258 = vmatmul.bf16.gmra.mxu0 %v198
    %v259 = vpop.f32.mrf.mxu0
    %v260 = vadd.f32 0.0, %v259
    %v261 = vpop.f32.mrf.mxu0
    %v262 = vadd.f32 0.0, %v261
    %263 = vmatmul.bf16.gmra.mxu0 %v199
    %v264 = vpop.f32.mrf.mxu0
    %v265 = vadd.f32 0.0, %v264
    %v266 = vpop.f32.mrf.mxu0
    %v267 = vadd.f32 0.0, %v266
    %268 = vdwg.mxu0
    %v273 = vunpack.c.l.b16 %v104
    %v274 = vunpack.c.l.b16 %v105
    %v275 = vunpack.c.l.b16 %v106
    %v276 = vunpack.c.l.b16 %v107
    %v277 = vpack.c.b16 %v274, %v273
    %v278 = vpack.c.b16 %v276, %v275
    %v297 = vunpack.c.l.b16 %v108
    %v298 = vunpack.c.l.b16 %v109
    %v299 = vunpack.c.l.b16 %v110
    %v300 = vunpack.c.l.b16 %v111
    %v301 = vunpack.c.l.b16 %v112
    %v302 = vunpack.c.l.b16 %v113
    %v303 = vunpack.c.l.b16 %v114
    %v304 = vunpack.c.l.b16 %v115
    %v305 = vunpack.c.l.b16 %v116
    %v306 = vunpack.c.l.b16 %v117
    %v307 = vunpack.c.l.b16 %v118
    %v308 = vunpack.c.l.b16 %v119
    %v309 = vunpack.c.l.b16 %v120
    %v310 = vunpack.c.l.b16 %v121
    %v311 = vunpack.c.l.b16 %v122
    %v312 = vunpack.c.l.b16 %v123
    %v313 = vpack.c.b16 %v298, %v297
    %v314 = vpack.c.b16 %v300, %v299
    %v315 = vpack.c.b16 %v302, %v301
    %v316 = vpack.c.b16 %v304, %v303
    %v317 = vpack.c.b16 %v306, %v305
    %v318 = vpack.c.b16 %v308, %v307
    %v319 = vpack.c.b16 %v310, %v309
    %v320 = vpack.c.b16 %v312, %v311
    %329 = vmatpush.bf16.msra.mxu0 %v320
    %330 = vmatpush.bf16.msra.mxu0 %v319
    %331 = vmatpush.bf16.msra.mxu0 %v318
    %332 = vmatpush.bf16.msra.mxu0 %v317
    %333 = vmatpush.bf16.msra.mxu0 %v316
    %334 = vmatpush.bf16.msra.mxu0 %v315
    %335 = vmatpush.bf16.msra.mxu0 %v314
    %336 = vmatpush.bf16.msra.mxu0 %v313
    %337 = vmatmul.bf16.gmra.mxu0 %v277
    %v338 = vpop.f32.mrf.mxu0
    %v339 = vadd.f32 %v260, %v338
    %v340 = vpop.f32.mrf.mxu0
    %v341 = vadd.f32 %v262, %v340
    %342 = vmatmul.bf16.gmra.mxu0 %v278
    %v343 = vpop.f32.mrf.mxu0
    %v344 = vadd.f32 %v265, %v343
    %v345 = vpop.f32.mrf.mxu0
    %v346 = vadd.f32 %v267, %v345
    %347 = vdwg.mxu0
    %v348 = vld [vmem:[#allocation2] sm:$0xe]
    %v349 = vld [vmem:[#allocation2 + $0xc] sm:$0xe]
    %vm354 = vcmask 1042432
    %vm355 = vcmask 1046532
    %vm356 = vmor %vm354, %vm355
    %v357 = vrot.slane %v348, 5
    %v358 = vrot.slane %v357, 4
    %v359 = vrot.slane %v105, 5
    %v360 = vsel %vm356, %v358, %v359
    %v361 = vrot.slane %v359, 4
    %v362 = vrot.slane %v124, 5
    %v363 = vsel %vm356, %v361, %v362
    %v364 = vrot.slane %v349, 5
    %v365 = vrot.slane %v364, 4
    %v366 = vrot.slane %v107, 5
    %v367 = vsel %vm356, %v365, %v366
    %v368 = vrot.slane %v366, 4
    %v369 = vrot.slane %v125, 5
    %v370 = vsel %vm356, %v368, %v369
    %s371 = scalar_lea.vmem %s1, 128
    %v372 = vld [vmem:[%s371] sm:$0xf]
    %v373 = vld [vmem:[%s371 + $0x4] sm:$0xf]
    %v374 = vld [vmem:[%s371 + $0x8] sm:$0xf]
    %v375 = vld [vmem:[%s371 + $0xc] sm:$0xf]
    %v376 = vld [vmem:[%s371 + $0x10] sm:$0xf]
    %v377 = vld [vmem:[%s371 + $0x14] sm:$0xf]
    %v378 = vld [vmem:[%s371 + $0x18] sm:$0xf]
    %v379 = vld [vmem:[%s371 + $0x1c] sm:$0xf]
    %v380 = vld [vmem:[%s371 + $0x20] sm:$0xf]
    %v381 = vld [vmem:[%s371 + $0x24] sm:$0xf]
    %v382 = vld [vmem:[%s371 + $0x28] sm:$0xf]
    %v383 = vld [vmem:[%s371 + $0x2c] sm:$0xf]
    %v384 = vld [vmem:[%s371 + $0x30] sm:$0xf]
    %v385 = vld [vmem:[%s371 + $0x34] sm:$0xf]
    %v386 = vld [vmem:[%s371 + $0x38] sm:$0xf]
    %v387 = vld [vmem:[%s371 + $0x3c] sm:$0xf]
    %v388 = vunpack.c.l.b16 %v360
    %v389 = vunpack.c.l.b16 %v363
    %v390 = vunpack.c.l.b16 %v367
    %v391 = vunpack.c.l.b16 %v370
    %v392 = vpack.c.b16 %v389, %v388
    %v393 = vpack.c.b16 %v391, %v390
    %v412 = vunpack.c.l.b16 %v372
    %v413 = vunpack.c.l.b16 %v373
    %v414 = vunpack.c.l.b16 %v374
    %v415 = vunpack.c.l.b16 %v375
    %v416 = vunpack.c.l.b16 %v376
    %v417 = vunpack.c.l.b16 %v377
    %v418 = vunpack.c.l.b16 %v378
    %v419 = vunpack.c.l.b16 %v379
    %v420 = vunpack.c.l.b16 %v380
    %v421 = vunpack.c.l.b16 %v381
    %v422 = vunpack.c.l.b16 %v382
    %v423 = vunpack.c.l.b16 %v383
    %v424 = vunpack.c.l.b16 %v384
    %v425 = vunpack.c.l.b16 %v385
    %v426 = vunpack.c.l.b16 %v386
    %v427 = vunpack.c.l.b16 %v387
    %v428 = vpack.c.b16 %v413, %v412
    %v429 = vpack.c.b16 %v415, %v414
    %v430 = vpack.c.b16 %v417, %v416
    %v431 = vpack.c.b16 %v419, %v418
    %v432 = vpack.c.b16 %v421, %v420
    %v433 = vpack.c.b16 %v423, %v422
    %v434 = vpack.c.b16 %v425, %v424
    %v435 = vpack.c.b16 %v427, %v426
    %444 = vmatpush.bf16.msra.mxu0 %v435
    %445 = vmatpush.bf16.msra.mxu0 %v434
    %446 = vmatpush.bf16.msra.mxu0 %v433
    %447 = vmatpush.bf16.msra.mxu0 %v432
    %448 = vmatpush.bf16.msra.mxu0 %v431
    %449 = vmatpush.bf16.msra.mxu0 %v430
    %450 = vmatpush.bf16.msra.mxu0 %v429
    %451 = vmatpush.bf16.msra.mxu0 %v428
    %452 = vmatmul.bf16.gmra.mxu0 %v392
    %v453 = vpop.f32.mrf.mxu0
    %v454 = vadd.f32 0.0, %v453
    %v455 = vpop.f32.mrf.mxu0
    %v456 = vadd.f32 0.0, %v455
    %457 = vmatmul.bf16.gmra.mxu0 %v393
    %v458 = vpop.f32.mrf.mxu0
    %v459 = vadd.f32 0.0, %v458
    %v460 = vpop.f32.mrf.mxu0
    %v461 = vadd.f32 0.0, %v460
    %462 = vdwg.mxu0
    %v463 = vadd.f32 %v339, %v454
    %v464 = vadd.f32 %v341, %v456
    %v465 = vadd.f32 %v344, %v459
    %v466 = vadd.f32 %v346, %v461
    %v467 = vld [vmem:[%s2] sm:$0x1]
    %v469 = vperm.slane %v467, 0
    %v471 = vadd.f32 %v463, %v469
    %v472 = vadd.f32 %v464, %v469
    %v473 = vadd.f32 %v465, %v469
    %v474 = vadd.f32 %v466, %v469
    %v475 = vtanh.pop %v471
    %v476 = vtanh.pop %v472
    %v477 = vtanh.pop %v473
    %v478 = vtanh.pop %v474
    %v479 = vpack.c.bf16 %v476, %v475
    %v480 = vpack.c.bf16 %v478, %v477
    %v481 = vld [vmem:[%s3] sm:$0xf]
    %v482 = vld [vmem:[%s3 + $0x4] sm:$0xf]
    %v483 = vld [vmem:[%s3 + $0x8] sm:$0xf]
    %v484 = vld [vmem:[%s3 + $0xc] sm:$0xf]
    %v485 = vld [vmem:[%s3 + $0x10] sm:$0xf]
    %v486 = vld [vmem:[%s3 + $0x14] sm:$0xf]
    %v487 = vld [vmem:[%s3 + $0x18] sm:$0xf]
    %v488 = vld [vmem:[%s3 + $0x1c] sm:$0xf]
    %v489 = vld [vmem:[%s3 + $0x20] sm:$0xf]
    %v490 = vld [vmem:[%s3 + $0x24] sm:$0xf]
    %v491 = vld [vmem:[%s3 + $0x28] sm:$0xf]
    %v492 = vld [vmem:[%s3 + $0x2c] sm:$0xf]
    %v493 = vld [vmem:[%s3 + $0x30] sm:$0xf]
    %v494 = vld [vmem:[%s3 + $0x34] sm:$0xf]
    %v495 = vld [vmem:[%s3 + $0x38] sm:$0xf]
    %v496 = vld [vmem:[%s3 + $0x3c] sm:$0xf]
    %v513 = vunpack.c.l.b16 %v481
    %v514 = vunpack.c.l.b16 %v482
    %v515 = vunpack.c.l.b16 %v483
    %v516 = vunpack.c.l.b16 %v484
    %v517 = vunpack.c.l.b16 %v485
    %v518 = vunpack.c.l.b16 %v486
    %v519 = vunpack.c.l.b16 %v487
    %v520 = vunpack.c.l.b16 %v488
    %v521 = vunpack.c.l.b16 %v489
    %v522 = vunpack.c.l.b16 %v490
    %v523 = vunpack.c.l.b16 %v491
    %v524 = vunpack.c.l.b16 %v492
    %v525 = vunpack.c.l.b16 %v493
    %v526 = vunpack.c.l.b16 %v494
    %v527 = vunpack.c.l.b16 %v495
    %v528 = vunpack.c.l.b16 %v496
    %v529 = vpack.c.b16 %v514, %v513
    %v530 = vpack.c.b16 %v516, %v515
    %v531 = vpack.c.b16 %v518, %v517
    %v532 = vpack.c.b16 %v520, %v519
    %v533 = vpack.c.b16 %v522, %v521
    %v534 = vpack.c.b16 %v524, %v523
    %v535 = vpack.c.b16 %v526, %v525
    %v536 = vpack.c.b16 %v528, %v527
    %545 = vmatpush.bf16.msra.mxu0 %v536
    %546 = vmatpush.bf16.msra.mxu0 %v535
    %547 = vmatpush.bf16.msra.mxu0 %v534
    %548 = vmatpush.bf16.msra.mxu0 %v533
    %549 = vmatpush.bf16.msra.mxu0 %v532
    %550 = vmatpush.bf16.msra.mxu0 %v531
    %551 = vmatpush.bf16.msra.mxu0 %v530
    %552 = vmatpush.bf16.msra.mxu0 %v529
    %553 = vmatmul.bf16.gmra.mxu0 %v479
    %v554 = vpop.f32.mrf.mxu0
    %v555 = vadd.f32 0.0, %v554
    %v556 = vpop.f32.mrf.mxu0
    %v557 = vadd.f32 0.0, %v556
    %558 = vmatmul.bf16.gmra.mxu0 %v480
    %v559 = vpop.f32.mrf.mxu0
    %v560 = vadd.f32 0.0, %v559
    %v561 = vpop.f32.mrf.mxu0
    %v562 = vadd.f32 0.0, %v561
    %563 = vdwg.mxu0
    %v564 = vld [vmem:[%s4] sm:$0xf]
    %v565 = vld [vmem:[%s4 + $0x4] sm:$0xf]
    %v566 = vld [vmem:[%s4 + $0x8] sm:$0xf]
    %v567 = vld [vmem:[%s4 + $0xc] sm:$0xf]
    %v568 = vld [vmem:[%s4 + $0x10] sm:$0xf]
    %v569 = vld [vmem:[%s4 + $0x14] sm:$0xf]
    %v570 = vld [vmem:[%s4 + $0x18] sm:$0xf]
    %v571 = vld [vmem:[%s4 + $0x1c] sm:$0xf]
    %v572 = vld [vmem:[%s4 + $0x20] sm:$0xf]
    %v573 = vld [vmem:[%s4 + $0x24] sm:$0xf]
    %v574 = vld [vmem:[%s4 + $0x28] sm:$0xf]
    %v575 = vld [vmem:[%s4 + $0x2c] sm:$0xf]
    %v576 = vld [vmem:[%s4 + $0x30] sm:$0xf]
    %v577 = vld [vmem:[%s4 + $0x34] sm:$0xf]
    %v578 = vld [vmem:[%s4 + $0x38] sm:$0xf]
    %v579 = vld [vmem:[%s4 + $0x3c] sm:$0xf]
    %v596 = vunpack.c.l.b16 %v564
    %v597 = vunpack.c.l.b16 %v565
    %v598 = vunpack.c.l.b16 %v566
    %v599 = vunpack.c.l.b16 %v567
    %v600 = vunpack.c.l.b16 %v568
    %v601 = vunpack.c.l.b16 %v569
    %v602 = vunpack.c.l.b16 %v570
    %v603 = vunpack.c.l.b16 %v571
    %v604 = vunpack.c.l.b16 %v572
    %v605 = vunpack.c.l.b16 %v573
    %v606 = vunpack.c.l.b16 %v574
    %v607 = vunpack.c.l.b16 %v575
    %v608 = vunpack.c.l.b16 %v576
    %v609 = vunpack.c.l.b16 %v577
    %v610 = vunpack.c.l.b16 %v578
    %v611 = vunpack.c.l.b16 %v579
    %v612 = vpack.c.b16 %v597, %v596
    %v613 = vpack.c.b16 %v599, %v598
    %v614 = vpack.c.b16 %v601, %v600
    %v615 = vpack.c.b16 %v603, %v602
    %v616 = vpack.c.b16 %v605, %v604
    %v617 = vpack.c.b16 %v607, %v606
    %v618 = vpack.c.b16 %v609, %v608
    %v619 = vpack.c.b16 %v611, %v610
    %628 = vmatpush.bf16.msra.mxu0 %v619
    %629 = vmatpush.bf16.msra.mxu0 %v618
    %630 = vmatpush.bf16.msra.mxu0 %v617
    %631 = vmatpush.bf16.msra.mxu0 %v616
    %632 = vmatpush.bf16.msra.mxu0 %v615
    %633 = vmatpush.bf16.msra.mxu0 %v614
    %634 = vmatpush.bf16.msra.mxu0 %v613
    %635 = vmatpush.bf16.msra.mxu0 %v612
    %636 = vmatmul.bf16.gmra.mxu0 %v479
    %v637 = vpop.f32.mrf.mxu0
    %v638 = vadd.f32 0.0, %v637
    %v639 = vpop.f32.mrf.mxu0
    %v640 = vadd.f32 0.0, %v639
    %641 = vmatmul.bf16.gmra.mxu0 %v480
    %v642 = vpop.f32.mrf.mxu0
    %v643 = vadd.f32 0.0, %v642
    %v644 = vpop.f32.mrf.mxu0
    %v645 = vadd.f32 0.0, %v644
    %646 = vdwg.mxu0
    %v647 = vmax.f32 %v555, %v557
    %v648 = vrot.slane %v647, 4
    %v649 = vmax.f32 %v647, %v648
    %v650 = vrot.slane %v649, 2
    %v651 = vmax.f32 %v649, %v650
    %v652 = vrot.slane %v651, 1
    %v653 = vmax.f32 %v651, %v652
    %v654 = vmax.f32 %v560, %v562
    %v655 = vrot.slane %v654, 4
    %v656 = vmax.f32 %v654, %v655
    %v657 = vrot.slane %v656, 2
    %v658 = vmax.f32 %v656, %v657
    %v659 = vrot.slane %v658, 1
    %v660 = vmax.f32 %v658, %v659
    %v661 = vsub.f32 %v555, %v653
    %v662 = vsub.f32 %v557, %v653
    %v663 = vsub.f32 %v560, %v660
    %v664 = vsub.f32 %v562, %v660
    %v665 = vmul.f32 %v661, 1.442695
    %v666 = vpow.pop %v665
    %v667 = vmul.f32 %v662, 1.442695
    %v668 = vpow.pop %v667
    %v669 = vmul.f32 %v663, 1.442695
    %v670 = vpow.pop %v669
    %v671 = vmul.f32 %v664, 1.442695
    %v672 = vpow.pop %v671
    %v673 = vadd.f32 %v666, %v668
    %v674 = vrot.slane %v673, 4
    %v675 = vadd.f32 %v673, %v674
    %v676 = vrot.slane %v675, 2
    %v677 = vadd.f32 %v675, %v676
    %v678 = vrot.slane %v677, 1
    %v679 = vadd.f32 %v677, %v678
    %v680 = vadd.f32 %v670, %v672
    %v681 = vrot.slane %v680, 4
    %v682 = vadd.f32 %v680, %v681
    %v683 = vrot.slane %v682, 2
    %v684 = vadd.f32 %v682, %v683
    %v685 = vrot.slane %v684, 1
    %v686 = vadd.f32 %v684, %v685
    %v687 = vrcp.pop %v679
    %v688 = vrcp.pop %v686
    %v689 = vmul.f32 %v666, %v687
    %v690 = vmul.f32 %v668, %v687
    %v691 = vmul.f32 %v670, %v688
    %v692 = vmul.f32 %v672, %v688
    %v693 = vmul.f32 %v689, %v638
    %v694 = vmul.f32 %v690, %v640
    %v695 = vmul.f32 %v691, %v643
    %v696 = vmul.f32 %v692, %v645
    %v697 = vadd.f32 %v693, %v694
    %v698 = vrot.slane %v697, 4
    %v699 = vadd.f32 %v697, %v698
    %v700 = vrot.slane %v699, 2
    %v701 = vadd.f32 %v699, %v700
    %v702 = vrot.slane %v701, 1
    %v703 = vadd.f32 %v701, %v702
    %v704 = vadd.f32 %v695, %v696
    %v705 = vrot.slane %v704, 4
    %v706 = vadd.f32 %v704, %v705
    %v707 = vrot.slane %v706, 2
    %v708 = vadd.f32 %v706, %v707
    %v709 = vrot.slane %v708, 1
    %v710 = vadd.f32 %v708, %v709
    %v711 = vld [vmem:[%s5] sm:$0x1]
    %v713 = vperm.slane %v711, 0
    %v715 = vadd.f32 %v703, %v713
    %v716 = vadd.f32 %v710, %v713
    %v719 = vrot.slane %v716, 7
    %vm720 = vcmask 1041409
    %v721 = vsel %vm720, %v719, %v715
    %723 = vst [vmem:[#allocation3] sm:$0x3] %v721
    // Predicated region
    $region26: #{multicnn_forward.1} parent=1 // pred_check
      _
    $region27: #{multicnn_forward.1} parent=1 // pred_check_branch
      %725 = sbr.rel (0) target = $region29
    $region28: #{multicnn_forward.1} parent=1 // pred_region
      %727 = vsyncadd [#allocation4], 0
      %s729 = sshll.u32 [#allocation3], 4
      %s730 = int_to_ptr.vmem [resolvable:$true] %s729
      %s731 = sshll.u32 %s6, 4
      %s732 = int_to_ptr.hbm [resolvable:$true] %s731
      %734 = dma.vmem_to_hbm [thread:$0]  %s730, 32, %s732, [#allocation4]
    $region29: #{multicnn_forward.1} parent=1 // pred_fallthru
      _
    // Predicated region
    $region30: #{multicnn_forward.1} parent=1 // pred_check
      _
    $region31: #{multicnn_forward.1} parent=1 // pred_check_branch
      %736 = sbr.rel (0) target = $region33
    $region32: #{multicnn_forward.1} parent=1 // pred_region
      %738 = dma.done [#allocation4], 32
    $region33: #{multicnn_forward.1} parent=1 // pred_fallthru
      _
    %739 = vsyncpa [#allocation4], 1

</llo_original>
